<compile_context>
chip_gen: v7x
topology: tpu7x:2x2x1
jax: 0.10.0
libtpu: 0.0.40
codegen_flags: <defaults>
</compile_context>

<pallas_src>
import functools

import jax
import jax.numpy as jnp
from jax.experimental import pallas as pl
from jax.experimental.pallas import tpu as pltpu

_LANE = 128
_SUBLANE = 8
_NEG_BIG = -1e30  # finite "-inf" for masking padded batch rows


def _round_up(n, m):
    return ((n + m - 1) // m) * m


def _refined_reciprocal(l):
    # EUP approximate reciprocal + one Newton step -> ~f32 accuracy, VALU nearly free.
    r = pl.reciprocal(l, approx=True)
    return r * (2.0 - l * r)


def _mlp_logits(x, w1_ref, b1_ref, w2_ref, b2_ref, w3_ref, b3_ref):
    # Weights are pre-transposed to (in, out) and lane-padded; biases are f32.
    # MXU accumulates in f32; activations are cast back to the compute dtype between layers.
    h1 = jnp.dot(x, w1_ref[...], preferred_element_type=jnp.float32) + b1_ref[...]
    h1 = jnp.maximum(h1, 0.0).astype(w2_ref.dtype)
    h2 = jnp.dot(h1, w2_ref[...], preferred_element_type=jnp.float32) + b2_ref[...]
    h2 = jnp.maximum(h2, 0.0).astype(w3_ref.dtype)
    return jnp.dot(h2, w3_ref[...], preferred_element_type=jnp.float32) + b3_ref[...]


def _fused_kernel(x_ref, w1_ref, b1_ref, w2_ref, b2_ref, w3_ref, b3_ref, out_ref,
                  *, n_valid):
    # Single-chunk path: whole problem in one VMEM block, fused softmax(dim=0).
    logits = _mlp_logits(x_ref[...], w1_ref, b1_ref, w2_ref, b2_ref, w3_ref, b3_ref)
    rows = jax.lax.broadcasted_iota(jnp.int32, logits.shape, 0)
    logits = jnp.where(rows < n_valid, logits, _NEG_BIG)   # mask padded sublane rows
    m = jnp.max(logits, axis=0, keepdims=True)
    e = jnp.exp(logits - m)
    l = jnp.sum(e, axis=0, keepdims=True)
    out_ref[...] = e * _refined_reciprocal(l)


def _phase1_kernel(x_ref, w1_ref, b1_ref, w2_ref, b2_ref, w3_ref, b3_ref,
                   logits_ref, m_out_ref, l_out_ref, m_sc, l_sc,
                   *, n_valid, tile_b):
    # Phase 1: compute this chunk's logits, store them, and update the online
    # per-column (dim=0) running max / exp-sum in VMEM scratch.
    i = pl.program_id(0)

    @pl.when(i == 0)
    def _():
        m_sc[...] = jnp.full(m_sc.shape, _NEG_BIG, dtype=m_sc.dtype)
        l_sc[...] = jnp.zeros(l_sc.shape, dtype=l_sc.dtype)

    logits = _mlp_logits(x_ref[...], w1_ref, b1_ref, w2_ref, b2_ref, w3_ref, b3_ref)
    rows = i * tile_b + jax.lax.broadcasted_iota(jnp.int32, logits.shape, 0)
    logits = jnp.where(rows < n_valid, logits, _NEG_BIG)   # mask padded batch rows
    logits_ref[...] = logits

    m_old = m_sc[...]
    m_new = jnp.maximum(m_old, jnp.max(logits, axis=0, keepdims=True))
    l_sc[...] = l_sc[...] * jnp.exp(m_old - m_new) + \
        jnp.sum(jnp.exp(logits - m_new), axis=0, keepdims=True)
    m_sc[...] = m_new

    @pl.when(i == pl.num_programs(0) - 1)
    def _():
        m_out_ref[...] = m_sc[...]
        l_out_ref[...] = l_sc[...]


def _phase2_kernel(logits_ref, m_ref, l_ref, out_ref):
    # Phase 2 (parallel over chunks): normalize with the global per-column stats.
    e = jnp.exp(logits_ref[...] - m_ref[...])
    out_ref[...] = e * _refined_reciprocal(l_ref[...])


def prepare_params(params, compute_dtype=jnp.float32):
    """One-time parameter prep (hoisted out of the per-call path).

    Transposes torch-convention weights to (in_features, out_features), zero-pads the
    output (lane) dims to multiples of 128 and casts weights to `compute_dtype`.
    Biases stay f32, shaped (1, padded_out). Padded rows/cols + zero bias keep the valid
    outputs exact; padded softmax columns are stripped after the call.
    """
    w1, b1 = params["w1"], params["b1"]   # (h0, in), (h0,)
    w2, b2 = params["w2"], params["b2"]   # (h1, h0), (h1,)
    w3, b3 = params["w3"], params["b3"]   # (out, h1), (out,)

    in_dim = w1.shape[1]
    h0, h1d, out_dim = w1.shape[0], w2.shape[0], w3.shape[0]
    dp_h0 = _round_up(h0, _LANE)
    dp_h1 = _round_up(h1d, _LANE)
    dp_out = _round_up(out_dim, _LANE)

    def padw(w_t, rows, cols):
        r, c = w_t.shape
        return jnp.pad(w_t, ((0, rows - r), (0, cols - c))).astype(compute_dtype)

    def padb(b, cols):
        return jnp.pad(b.reshape(1, -1).astype(jnp.float32), ((0, 0), (0, cols - b.shape[0])))

    return {
        "w1": padw(w1.T, in_dim, dp_h0), "b1": padb(b1, dp_h0),
        "w2": padw(w2.T, dp_h0, dp_h1), "b2": padb(b2, dp_h1),
        "w3": padw(w3.T, dp_h1, dp_out), "b3": padb(b3, dp_out),
    }


def _resident(arr):
    # Full-array block, same block every grid step -> stays resident in VMEM (no re-DMA).
    nd = arr.ndim
    return pl.BlockSpec(arr.shape, lambda i, _z=(0,) * nd: _z)


@functools.partial(jax.jit, static_argnames=("out_dim", "tile_b"))
def policy_net_forward(x, prepared, out_dim, *, tile_b=1024):
    """x: (B, in_dim) float32. prepared: output of prepare_params(). Returns (B, out_dim)."""
    B, in_dim = x.shape
    compute_dtype = prepared["w1"].dtype
    dp_out = prepared["w3"].shape[1]

    # Batch tiling: sublane-aligned chunks; only rows of x are padded per call.
    tile = max(_SUBLANE, min(_round_up(tile_b, _SUBLANE), _round_up(B, _SUBLANE)))
    b_pad = _round_up(B, tile)
    n_chunks = b_pad // tile
    x_p = jnp.pad(x, ((0, b_pad - B), (0, 0))).astype(compute_dtype)

    w_args = (prepared["w1"], prepared["b1"], prepared["w2"], prepared["b2"],
              prepared["w3"], prepared["b3"])
    w_specs = [_resident(a) for a in w_args]
    x_spec = pl.BlockSpec((tile, in_dim), lambda i: (i, 0))
    chunk_out_spec = pl.BlockSpec((tile, dp_out), lambda i: (i, 0))
    stat_spec = pl.BlockSpec((1, dp_out), lambda i: (0, 0))

    if n_chunks == 1:
        # Tiny evaluation: one fused VMEM-resident block, single launch.
        out_padded = pl.pallas_call(
            functools.partial(_fused_kernel, n_valid=B),
            grid=(1,),
            in_specs=[x_spec] + w_specs,
            out_specs=chunk_out_spec,
            out_shape=jax.ShapeDtypeStruct((b_pad, dp_out), jnp.float32),
            compiler_params=pltpu.CompilerParams(dimension_semantics=("arbitrary",)),
        )(x_p, *w_args)
    else:
        # Phase 1: logits + online per-column max / exp-sum (reduction axis -> "arbitrary").
        logits, m_stat, l_stat = pl.pallas_call(
            functools.partial(_phase1_kernel, n_valid=B, tile_b=tile),
            grid=(n_chunks,),
            in_specs=[x_spec] + w_specs,
            out_specs=(chunk_out_spec, stat_spec, stat_spec),
            out_shape=(jax.ShapeDtypeStruct((b_pad, dp_out), jnp.float32),
                       jax.ShapeDtypeStruct((1, dp_out), jnp.float32),
                       jax.ShapeDtypeStruct((1, dp_out), jnp.float32)),
            scratch_shapes=[pltpu.VMEM((1, dp_out), jnp.float32),
                            pltpu.VMEM((1, dp_out), jnp.float32)],
            compiler_params=pltpu.CompilerParams(dimension_semantics=("arbitrary",)),
        )(x_p, *w_args)

        # Phase 2: normalize each chunk (independent -> "parallel", shards across TCs).
        out_padded = pl.pallas_call(
            _phase2_kernel,
            grid=(n_chunks,),
            in_specs=[chunk_out_spec, stat_spec, stat_spec],
            out_specs=chunk_out_spec,
            out_shape=jax.ShapeDtypeStruct((b_pad, dp_out), jnp.float32),
            compiler_params=pltpu.CompilerParams(dimension_semantics=("parallel",)),
        )(logits, m_stat, l_stat)

    # Strip padded batch rows and padded lane columns.
    return out_padded[:B, :out_dim]


def init_params(key, in_dim, hidden_dims, out_dim):
    """Deterministic synthetic parameters with PyTorch nn.Linear shapes: W (out,in), b (out,)."""
    ks = jax.random.split(key, 6)

    def lin(kw, kb, fan_in, fan_out):
        bound = 1.0 / jnp.sqrt(fan_in)
        w = jax.random.uniform(kw, (fan_out, fan_in), jnp.float32, -bound, bound)
        b = jax.random.uniform(kb, (fan_out,), jnp.float32, -bound, bound)
        return w, b

    w1, b1 = lin(ks[0], ks[1], in_dim, hidden_dims[0])
    w2, b2 = lin(ks[2], ks[3], hidden_dims[0], hidden_dims[1])
    w3, b3 = lin(ks[4], ks[5], hidden_dims[1], out_dim)
    return {"w1": w1, "b1": b1, "w2": w2, "b2": b2, "w3": w3, "b3": b3}


def _reference(x, p):
    hp = jax.lax.Precision.HIGHEST
    h1 = jnp.maximum(jnp.dot(x, p["w1"].T, precision=hp) + p["b1"], 0.0)
    h2 = jnp.maximum(jnp.dot(h1, p["w2"].T, precision=hp) + p["b2"], 0.0)
    logits = jnp.dot(h2, p["w3"].T, precision=hp) + p["b3"]
    return jax.nn.softmax(logits, axis=0)


if __name__ == "__main__":
    in_dim, hidden_dims, out_dim = 16, (32, 32), 8

    key = jax.random.PRNGKey(0)
    kx, kp, kx2 = jax.random.split(key, 3)
    params = init_params(kp, in_dim, hidden_dims, out_dim)

    # One-time parameter prep (hoisted out of the per-call path), f32 compute.
    prepared_f32 = prepare_params(params, compute_dtype=jnp.float32)

    # --- tiny single-evaluation case (fused single-block path) ---
    x_small = jax.random.normal(kx, (4, in_dim), dtype=jnp.float32)
    out_small = jax.block_until_ready(policy_net_forward(x_small, prepared_f32, out_dim))
    ref_small = _reference(x_small, params)
    assert out_small.shape == (4, out_dim)
    assert jnp.allclose(out_small, ref_small, atol=1e-5, rtol=1e-5), "small-batch mismatch"

    # --- batched case (resident weights, two-phase softmax over dim=0) ---
    x_big = jax.random.normal(kx2, (256, in_dim), dtype=jnp.float32)
    out_big = jax.block_until_ready(policy_net_forward(x_big, prepared_f32, out_dim, tile_b=128))
    ref_big = _reference(x_big, params)
    assert out_big.shape == (256, out_dim)
    assert jnp.allclose(out_big, ref_big, atol=1e-5, rtol=1e-5), "batched f32 mismatch"

    # --- batched bf16 compute (MXU-native weights/activations, f32 accumulation) ---
    prepared_bf16 = prepare_params(params, compute_dtype=jnp.bfloat16)
    out_bf16 = jax.block_until_ready(policy_net_forward(x_big, prepared_bf16, out_dim, tile_b=128))
    assert jnp.allclose(out_bf16, ref_big, atol=2e-2, rtol=0.0), "batched bf16 mismatch"

    print("KERNEL_OK")
</pallas_src>

<mosaic_0001>
module attributes {stable_mosaic.version = 11 : i64} {
  func.func @_fused_kernel(%arg0: i32, %arg1: memref<8x16xf32, #tpu.memory_space<vmem>>, %arg2: memref<16x128xf32, #tpu.memory_space<vmem>>, %arg3: memref<1x128xf32, #tpu.memory_space<vmem>>, %arg4: memref<128x128xf32, #tpu.memory_space<vmem>>, %arg5: memref<1x128xf32, #tpu.memory_space<vmem>>, %arg6: memref<128x128xf32, #tpu.memory_space<vmem>>, %arg7: memref<1x128xf32, #tpu.memory_space<vmem>>, %arg8: memref<8x128xf32, #tpu.memory_space<vmem>>) attributes {dimension_semantics = [#tpu.dimension_semantics<arbitrary>], iteration_bounds = array<i64: 1>, scalar_prefetch = 0 : i64, scratch_operands = 0 : i64, tpu.core_type = #tpu.core_type<tc>, window_params = [{transform_indices = @transform_0, window_bounds = array<i64: 8, 16>}, {pipeline_mode = #tpu.pipeline_mode<synchronous>, transform_indices = @transform_1, window_bounds = array<i64: 16, 128>}, {pipeline_mode = #tpu.pipeline_mode<synchronous>, transform_indices = @transform_2, window_bounds = array<i64: 1, 128>}, {pipeline_mode = #tpu.pipeline_mode<synchronous>, transform_indices = @transform_3, window_bounds = array<i64: 128, 128>}, {pipeline_mode = #tpu.pipeline_mode<synchronous>, transform_indices = @transform_4, window_bounds = array<i64: 1, 128>}, {pipeline_mode = #tpu.pipeline_mode<synchronous>, transform_indices = @transform_5, window_bounds = array<i64: 128, 128>}, {pipeline_mode = #tpu.pipeline_mode<synchronous>, transform_indices = @transform_6, window_bounds = array<i64: 1, 128>}, {transform_indices = @transform_7, window_bounds = array<i64: 8, 128>}]} {
    %c0 = arith.constant 0 : index
    %c0_0 = arith.constant 0 : index
    %0 = vector.load %arg1[%c0, %c0_0] : memref<8x16xf32, #tpu.memory_space<vmem>>, vector<8x16xf32>
    %c0_1 = arith.constant 0 : index
    %c0_2 = arith.constant 0 : index
    %1 = vector.load %arg2[%c0_1, %c0_2] : memref<16x128xf32, #tpu.memory_space<vmem>>, vector<16x128xf32>
    %cst = arith.constant dense<0.000000e+00> : vector<8x128xf32>
    %2 = tpu.matmul %0, %1, %cst {dimension_numbers = #tpu.dot_dimension_numbers<[1], [0], [0], [1], [0, 0, 1, 1], [], []>} : vector<8x16xf32>, vector<16x128xf32>, vector<8x128xf32> -> vector<8x128xf32>
    %c0_3 = arith.constant 0 : index
    %c0_4 = arith.constant 0 : index
    %3 = vector.load %arg3[%c0_3, %c0_4] : memref<1x128xf32, #tpu.memory_space<vmem>>, vector<1x128xf32>
    %4 = vector.broadcast %3 : vector<1x128xf32> to vector<8x128xf32>
    %5 = arith.addf %2, %4 : vector<8x128xf32>
    %cst_5 = arith.constant 0.000000e+00 : f32
    %6 = vector.broadcast %cst_5 : f32 to vector<8x128xf32>
    %7 = arith.maximumf %5, %6 : vector<8x128xf32>
    %c0_6 = arith.constant 0 : index
    %c0_7 = arith.constant 0 : index
    %8 = vector.load %arg4[%c0_6, %c0_7] : memref<128x128xf32, #tpu.memory_space<vmem>>, vector<128x128xf32>
    %cst_8 = arith.constant dense<0.000000e+00> : vector<8x128xf32>
    %9 = tpu.matmul %7, %8, %cst_8 {dimension_numbers = #tpu.dot_dimension_numbers<[1], [0], [0], [1], [0, 0, 1, 1], [], []>} : vector<8x128xf32>, vector<128x128xf32>, vector<8x128xf32> -> vector<8x128xf32>
    %c0_9 = arith.constant 0 : index
    %c0_10 = arith.constant 0 : index
    %10 = vector.load %arg5[%c0_9, %c0_10] : memref<1x128xf32, #tpu.memory_space<vmem>>, vector<1x128xf32>
    %11 = vector.broadcast %10 : vector<1x128xf32> to vector<8x128xf32>
    %12 = arith.addf %9, %11 : vector<8x128xf32>
    %cst_11 = arith.constant 0.000000e+00 : f32
    %13 = vector.broadcast %cst_11 : f32 to vector<8x128xf32>
    %14 = arith.maximumf %12, %13 : vector<8x128xf32>
    %c0_12 = arith.constant 0 : index
    %c0_13 = arith.constant 0 : index
    %15 = vector.load %arg6[%c0_12, %c0_13] : memref<128x128xf32, #tpu.memory_space<vmem>>, vector<128x128xf32>
    %cst_14 = arith.constant dense<0.000000e+00> : vector<8x128xf32>
    %16 = tpu.matmul %14, %15, %cst_14 {dimension_numbers = #tpu.dot_dimension_numbers<[1], [0], [0], [1], [0, 0, 1, 1], [], []>} : vector<8x128xf32>, vector<128x128xf32>, vector<8x128xf32> -> vector<8x128xf32>
    %c0_15 = arith.constant 0 : index
    %c0_16 = arith.constant 0 : index
    %17 = vector.load %arg7[%c0_15, %c0_16] : memref<1x128xf32, #tpu.memory_space<vmem>>, vector<1x128xf32>
    %18 = vector.broadcast %17 : vector<1x128xf32> to vector<8x128xf32>
    %19 = arith.addf %16, %18 : vector<8x128xf32>
    %20 = tpu.iota {dimensions = array<i32: 0>} : vector<8x128xi32>
    %c4_i32 = arith.constant 4 : i32
    %21 = vector.broadcast %c4_i32 : i32 to vector<8x128xi32>
    %22 = arith.cmpi slt, %20, %21 : vector<8x128xi32>
    %cst_17 = arith.constant -1.000000e+30 : f32
    %23 = vector.broadcast %cst_17 : f32 to vector<8x128xf32>
    %24 = arith.select %22, %19, %23 : vector<8x128xi1>, vector<8x128xf32>
    %cst_18 = arith.constant dense<0xFF800000> : vector<128xf32>
    %25 = vector.multi_reduction <maximumf>, %24, %cst_18 [0] : vector<8x128xf32> to vector<128xf32>
    %26 = vector.shape_cast %25 : vector<128xf32> to vector<1x128xf32>
    %27 = vector.broadcast %26 : vector<1x128xf32> to vector<8x128xf32>
    %28 = arith.subf %24, %27 : vector<8x128xf32>
    %29 = math.exp %28 : vector<8x128xf32>
    %cst_19 = arith.constant dense<0.000000e+00> : vector<128xf32>
    %30 = vector.multi_reduction <add>, %29, %cst_19 [0] : vector<8x128xf32> to vector<128xf32>
    %31 = vector.shape_cast %30 : vector<128xf32> to vector<1x128xf32>
    %32 = tpu.reciprocal %31 {approx = true} : vector<1x128xf32> -> vector<1x128xf32>
    %33 = arith.mulf %31, %32 : vector<1x128xf32>
    %cst_20 = arith.constant 2.000000e+00 : f32
    %34 = vector.broadcast %cst_20 : f32 to vector<1x128xf32>
    %35 = arith.subf %34, %33 : vector<1x128xf32>
    %36 = arith.mulf %32, %35 : vector<1x128xf32>
    %37 = vector.broadcast %36 : vector<1x128xf32> to vector<8x128xf32>
    %38 = arith.mulf %29, %37 : vector<8x128xf32>
    %c0_21 = arith.constant 0 : index
    %c0_22 = arith.constant 0 : index
    %39 = vector.load %arg8[%c0_21, %c0_22] : memref<8x128xf32, #tpu.memory_space<vmem>>, vector<8x128xf32>
    tpu.vector_store %arg8[%c0_21, %c0_22], %38 {strides = array<i32>} : memref<8x128xf32, #tpu.memory_space<vmem>>, vector<8x128xf32>,
    return
  }
  func.func @transform_0(%arg0: i32) -> (i32, i32) {
    %c0_i32 = arith.constant 0 : i32
    %c0_i32_0 = arith.constant 0 : i32
    return %arg0, %c0_i32 : i32, i32
  }
  func.func @transform_1(%arg0: i32) -> (i32, i32) {
    %c0_i32 = arith.constant 0 : i32
    %c0_i32_0 = arith.constant 0 : i32
    %c0_i32_1 = arith.constant 0 : i32
    return %c0_i32, %c0_i32_0 : i32, i32
  }
  func.func @transform_2(%arg0: i32) -> (i32, i32) {
    %c0_i32 = arith.constant 0 : i32
    %c0_i32_0 = arith.constant 0 : i32
    %c0_i32_1 = arith.constant 0 : i32
    return %c0_i32, %c0_i32_0 : i32, i32
  }
  func.func @transform_3(%arg0: i32) -> (i32, i32) {
    %c0_i32 = arith.constant 0 : i32
    %c0_i32_0 = arith.constant 0 : i32
    %c0_i32_1 = arith.constant 0 : i32
    return %c0_i32, %c0_i32_0 : i32, i32
  }
  func.func @transform_4(%arg0: i32) -> (i32, i32) {
    %c0_i32 = arith.constant 0 : i32
    %c0_i32_0 = arith.constant 0 : i32
    %c0_i32_1 = arith.constant 0 : i32
    return %c0_i32, %c0_i32_0 : i32, i32
  }
  func.func @transform_5(%arg0: i32) -> (i32, i32) {
    %c0_i32 = arith.constant 0 : i32
    %c0_i32_0 = arith.constant 0 : i32
    %c0_i32_1 = arith.constant 0 : i32
    return %c0_i32, %c0_i32_0 : i32, i32
  }
  func.func @transform_6(%arg0: i32) -> (i32, i32) {
    %c0_i32 = arith.constant 0 : i32
    %c0_i32_0 = arith.constant 0 : i32
    %c0_i32_1 = arith.constant 0 : i32
    return %c0_i32, %c0_i32_0 : i32, i32
  }
  func.func @transform_7(%arg0: i32) -> (i32, i32) {
    %c0_i32 = arith.constant 0 : i32
    %c0_i32_0 = arith.constant 0 : i32
    return %arg0, %c0_i32 : i32, i32
  }
}

</mosaic_0001>

<llo_original>
// kernel: policy_net_forward.1
$region0: #{policy_net_forward.1}
  #allocation0 [shape = 'u32[]', space=smem, size = 0x4, offset = 0x4, fixed_abs, tag = 'smem constant byte address 0x4 - core index']
  #allocation1 [shape = 'u32[144,128]{1,0:T(1,128)}', space=vmem, size = 0x12000, scoped, tag = 'internal scratch']
  %s0 = inlined_call_operand.vmem [shape: f32[8,16], index: 0, kind: input, shape index: {}]
  %s1 = inlined_call_operand.vmem [shape: f32[16,128], index: 1, kind: input, shape index: {}]
  %s2 = inlined_call_operand.vmem [shape: f32[1,128], index: 2, kind: input, shape index: {}]
  %s3 = inlined_call_operand.hbm [shape: f32[128,128], index: 3, kind: input, shape index: {}]
  %s4 = inlined_call_operand.vmem [shape: f32[1,128], index: 4, kind: input, shape index: {}]
  %s5 = inlined_call_operand.hbm [shape: f32[128,128], index: 5, kind: input, shape index: {}]
  %s6 = inlined_call_operand.vmem [shape: f32[1,128], index: 6, kind: input, shape index: {}]
  %s7 = inlined_call_operand.vmem [shape: f32[8,128], index: 7, kind: output, shape index: {}]
  %s8 = sld [smem:[#allocation0]]
  $region46: #{policy_net_forward.1} parent=0
    _
  %s10 = ssub.s32 1, %s8
  %s11 = scalar_select 0, %s10, %s8
  $region1: #{policy_net_forward.1} parent=0
    #allocation2 [shape = 'u8[65536]{0}', space=vmem, size = 0x10000, scoped, tag = 'input window, operand 3, single buffered']
    #allocation3 [shape = 's32[1]{0}', space=sflag, size = 0x4, scoped, tag = 'scoped memory for policy_net_forward.1']
    #allocation4 [shape = 'u8[65536]{0}', space=vmem, size = 0x10000, scoped, tag = 'input window, operand 5, single buffered']
    #allocation5 [shape = 's32[1]{0}', space=sflag, size = 0x4, scoped, tag = 'scoped memory for policy_net_forward.1']
    %12 = vsyncpa [#allocation3], 0
    %13 = vsyncpa [#allocation5], 0
    // Predicated region
    $region2: #{policy_net_forward.1} parent=1 // pred_check
      _
    $region3: #{policy_net_forward.1} parent=1 // pred_check_branch
      %15 = sbr.rel (0) target = $region5
    $region4: #{policy_net_forward.1} parent=1 // pred_region
      _
    $region5: #{policy_net_forward.1} parent=1 // pred_fallthru
      _
    // Predicated region
    $region6: #{policy_net_forward.1} parent=1 // pred_check
      _
    $region7: #{policy_net_forward.1} parent=1 // pred_check_branch
      %17 = sbr.rel (0) target = $region9
    $region8: #{policy_net_forward.1} parent=1 // pred_region
      _
    $region9: #{policy_net_forward.1} parent=1 // pred_fallthru
      _
    // Predicated region
    $region10: #{policy_net_forward.1} parent=1 // pred_check
      _
    $region11: #{policy_net_forward.1} parent=1 // pred_check_branch
      %19 = sbr.rel (0) target = $region13
    $region12: #{policy_net_forward.1} parent=1 // pred_region
      _
    $region13: #{policy_net_forward.1} parent=1 // pred_fallthru
      _
    // Predicated region
    $region14: #{policy_net_forward.1} parent=1 // pred_check
      _
    $region15: #{policy_net_forward.1} parent=1 // pred_check_branch
      %21 = sbr.rel (0) target = $region17
    $region16: #{policy_net_forward.1} parent=1 // pred_region
      %s23 = ssub.s32 2048, 2048
      %24 = vsyncadd [#allocation3], %s23
      %s25 = sshll.u32 [#allocation2], 4
      %s26 = int_to_ptr.vmem [resolvable:$true] %s25
      %31 = dma.hbm_to_vmem [thread:$0]  %s3, 2048, %s26, [#allocation3], 128, 128, 8
    $region17: #{policy_net_forward.1} parent=1 // pred_fallthru
      _
    // Predicated region
    $region18: #{policy_net_forward.1} parent=1 // pred_check
      _
    $region19: #{policy_net_forward.1} parent=1 // pred_check_branch
      %33 = sbr.rel (0) target = $region21
    $region20: #{policy_net_forward.1} parent=1 // pred_region
      _
    $region21: #{policy_net_forward.1} parent=1 // pred_fallthru
      _
    // Predicated region
    $region22: #{policy_net_forward.1} parent=1 // pred_check
      _
    $region23: #{policy_net_forward.1} parent=1 // pred_check_branch
      %35 = sbr.rel (0) target = $region25
    $region24: #{policy_net_forward.1} parent=1 // pred_region
      %s37 = ssub.s32 2048, 2048
      %38 = vsyncadd [#allocation5], %s37
      %s39 = sshll.u32 [#allocation4], 4
      %s40 = int_to_ptr.vmem [resolvable:$true] %s39
      %45 = dma.hbm_to_vmem [thread:$0]  %s5, 2048, %s40, [#allocation5], 128, 128, 8
    $region25: #{policy_net_forward.1} parent=1 // pred_fallthru
      _
    // Predicated region
    $region26: #{policy_net_forward.1} parent=1 // pred_check
      _
    $region27: #{policy_net_forward.1} parent=1 // pred_check_branch
      %47 = sbr.rel (0) target = $region29
    $region28: #{policy_net_forward.1} parent=1 // pred_region
      _
    $region29: #{policy_net_forward.1} parent=1 // pred_fallthru
      _
    // Predicated region
    $region30: #{policy_net_forward.1} parent=1 // pred_check
      _
    $region31: #{policy_net_forward.1} parent=1 // pred_check_branch
      %49 = sbr.rel (0) target = $region33
    $region32: #{policy_net_forward.1} parent=1 // pred_region
      %50 = dma.done [#allocation3], 2048
    $region33: #{policy_net_forward.1} parent=1 // pred_fallthru
      _
    // Predicated region
    $region34: #{policy_net_forward.1} parent=1 // pred_check
      _
    $region35: #{policy_net_forward.1} parent=1 // pred_check_branch
      %52 = sbr.rel (0) target = $region37
    $region36: #{policy_net_forward.1} parent=1 // pred_region
      %53 = dma.done [#allocation5], 2048
    $region37: #{policy_net_forward.1} parent=1 // pred_fallthru
      _
    %v54 = vld [vmem:[%s0] sm:$0xff]
    %v55 = vld [vmem:[%s1] sm:$0xff]
    %v56 = vld [vmem:[%s1 + $0x8] sm:$0xff]
    %v57 = vld [vmem:[%s2] sm:$0x1]
    %v59 = vlaneseq
    %v60 = vshrl.u32 %v59, 7
    %v61 = vsub.s32 0, %v60
    %v62 = vrot.slane %v57, %v61
    %vm64 = vcmask 130048
    %v66 = vsel %vm64, %v54, 0
    %68 = vmatprep.subr.mxu0 0.0
    %69 = vmatpush1.msra.mxu0 %v55
    %70 = vmatprep.subr.mxu0 0.0
    %71 = vmatpush1.msra.mxu0 %v56
    %72 = vmatprep.subr.mxu0 0.0
    %73 = vmatpush1.msra.mxu0 0.0
    %74 = vmatprep.subr.mxu0 0.0
    %75 = vmatpush1.msra.mxu0 0.0
    %76 = vmatprep.subr.mxu0 0.0
    %77 = vmatpush1.msra.mxu0 0.0
    %78 = vmatprep.subr.mxu0 0.0
    %79 = vmatpush1.msra.mxu0 0.0
    %80 = vmatprep.subr.mxu0 0.0
    %81 = vmatpush1.msra.mxu0 0.0
    %82 = vmatprep.subr.mxu0 0.0
    %83 = vmatpush1.msra.mxu0 0.0
    %84 = vmatprep.subr.mxu0 0.0
    %85 = vmatpush1.msra.mxu0 0.0
    %86 = vmatprep.subr.mxu0 0.0
    %87 = vmatpush1.msra.mxu0 0.0
    %88 = vmatprep.subr.mxu0 0.0
    %89 = vmatpush1.msra.mxu0 0.0
    %90 = vmatprep.subr.mxu0 0.0
    %91 = vmatpush1.msra.mxu0 0.0
    %92 = vmatprep.subr.mxu0 0.0
    %93 = vmatpush1.msra.mxu0 0.0
    %94 = vmatprep.subr.mxu0 0.0
    %95 = vmatpush1.msra.mxu0 0.0
    %96 = vmatprep.subr.mxu0 0.0
    %97 = vmatpush1.msra.mxu0 0.0
    %98 = vmatprep.subr.mxu0 0.0
    %99 = vmatpush1.msra.mxu0 0.0
    %100 = vmatprep.subr.mxu0 0.0
    %101 = vmatpush1.msra.mxu0 0.0
    %102 = vmatprep.subr.mxu0 0.0
    %103 = vmatpush1.msra.mxu0 0.0
    %104 = vmatprep.subr.mxu0 0.0
    %105 = vmatpush1.msra.mxu0 0.0
    %106 = vmatprep.subr.mxu0 0.0
    %107 = vmatpush1.msra.mxu0 0.0
    %108 = vmatprep.subr.mxu0 0.0
    %109 = vmatpush1.msra.mxu0 0.0
    %110 = vmatprep.subr.mxu0 0.0
    %111 = vmatpush1.msra.mxu0 0.0
    %112 = vmatprep.subr.mxu0 0.0
    %113 = vmatpush1.msra.mxu0 0.0
    %114 = vmatprep.subr.mxu0 0.0
    %115 = vmatpush1.msra.mxu0 0.0
    %116 = vmatprep.subr.mxu0 0.0
    %117 = vmatpush1.msra.mxu0 0.0
    %118 = vmatprep.subr.mxu0 0.0
    %119 = vmatpush1.msra.mxu0 0.0
    %120 = vmatprep.subr.mxu0 0.0
    %121 = vmatpush1.msra.mxu0 0.0
    %122 = vmatprep.subr.mxu0 0.0
    %123 = vmatpush1.msra.mxu0 0.0
    %124 = vmatprep.subr.mxu0 0.0
    %125 = vmatpush1.msra.mxu0 0.0
    %126 = vmatprep.subr.mxu0 0.0
    %127 = vmatpush1.msra.mxu0 0.0
    %128 = vmatprep.subr.mxu0 0.0
    %129 = vmatpush1.msra.mxu0 0.0
    %130 = vmatprep.subr.mxu0 0.0
    %131 = vmatpush1.msra.mxu0 0.0
    %132 = vmatprep.mubr.f32.mxu0 0.0
    %133 = vmatmul.mubr.f32.gmra.mrb[0].mxu0 %v66
    %v134 = vpop.f32.mrb[0].mxu0
    %v135 = vadd.f32 %v62, %v134
    %v136 = vpop.f32.mrb[0].mxu0
    %137 = vdwg.mxu0
    %v138 = vmax.f32 %v135, 0.0
    %v139 = vld [vmem:[#allocation2] sm:$0xff]
    %v140 = vld [vmem:[#allocation2 + $0x8] sm:$0xff]
    %v141 = vld [vmem:[#allocation2 + $0x10] sm:$0xff]
    %v142 = vld [vmem:[#allocation2 + $0x18] sm:$0xff]
    %v143 = vld [vmem:[#allocation2 + $0x20] sm:$0xff]
    %v144 = vld [vmem:[#allocation2 + $0x28] sm:$0xff]
    %v145 = vld [vmem:[#allocation2 + $0x30] sm:$0xff]
    %v146 = vld [vmem:[#allocation2 + $0x38] sm:$0xff]
    %v147 = vld [vmem:[#allocation2 + $0x40] sm:$0xff]
    %v148 = vld [vmem:[#allocation2 + $0x48] sm:$0xff]
    %v149 = vld [vmem:[#allocation2 + $0x50] sm:$0xff]
    %v150 = vld [vmem:[#allocation2 + $0x58] sm:$0xff]
    %v151 = vld [vmem:[#allocation2 + $0x60] sm:$0xff]
    %v152 = vld [vmem:[#allocation2 + $0x68] sm:$0xff]
    %v153 = vld [vmem:[#allocation2 + $0x70] sm:$0xff]
    %v154 = vld [vmem:[#allocation2 + $0x78] sm:$0xff]
    %v155 = vld [vmem:[%s4] sm:$0x1]
    %v157 = vlaneseq
    %v158 = vshrl.u32 %v157, 7
    %v159 = vsub.s32 0, %v158
    %v160 = vrot.slane %v155, %v159
    %162 = vmatprep.subr.mxu0 0.0
    %163 = vmatpush1.msra.mxu0 %v139
    %164 = vmatprep.subr.mxu0 0.0
    %165 = vmatpush1.msra.mxu0 %v140
    %166 = vmatprep.subr.mxu0 0.0
    %167 = vmatpush1.msra.mxu0 %v141
    %168 = vmatprep.subr.mxu0 0.0
    %169 = vmatpush1.msra.mxu0 %v142
    %170 = vmatprep.subr.mxu0 0.0
    %171 = vmatpush1.msra.mxu0 %v143
    %172 = vmatprep.subr.mxu0 0.0
    %173 = vmatpush1.msra.mxu0 %v144
    %174 = vmatprep.subr.mxu0 0.0
    %175 = vmatpush1.msra.mxu0 %v145
    %176 = vmatprep.subr.mxu0 0.0
    %177 = vmatpush1.msra.mxu0 %v146
    %178 = vmatprep.subr.mxu0 0.0
    %179 = vmatpush1.msra.mxu0 %v147
    %180 = vmatprep.subr.mxu0 0.0
    %181 = vmatpush1.msra.mxu0 %v148
    %182 = vmatprep.subr.mxu0 0.0
    %183 = vmatpush1.msra.mxu0 %v149
    %184 = vmatprep.subr.mxu0 0.0
    %185 = vmatpush1.msra.mxu0 %v150
    %186 = vmatprep.subr.mxu0 0.0
    %187 = vmatpush1.msra.mxu0 %v151
    %188 = vmatprep.subr.mxu0 0.0
    %189 = vmatpush1.msra.mxu0 %v152
    %190 = vmatprep.subr.mxu0 0.0
    %191 = vmatpush1.msra.mxu0 %v153
    %192 = vmatprep.subr.mxu0 0.0
    %193 = vmatpush1.msra.mxu0 %v154
    %194 = vmatprep.subr.mxu0 0.0
    %195 = vmatpush1.msra.mxu0 0.0
    %196 = vmatprep.subr.mxu0 0.0
    %197 = vmatpush1.msra.mxu0 0.0
    %198 = vmatprep.subr.mxu0 0.0
    %199 = vmatpush1.msra.mxu0 0.0
    %200 = vmatprep.subr.mxu0 0.0
    %201 = vmatpush1.msra.mxu0 0.0
    %202 = vmatprep.subr.mxu0 0.0
    %203 = vmatpush1.msra.mxu0 0.0
    %204 = vmatprep.subr.mxu0 0.0
    %205 = vmatpush1.msra.mxu0 0.0
    %206 = vmatprep.subr.mxu0 0.0
    %207 = vmatpush1.msra.mxu0 0.0
    %208 = vmatprep.subr.mxu0 0.0
    %209 = vmatpush1.msra.mxu0 0.0
    %210 = vmatprep.subr.mxu0 0.0
    %211 = vmatpush1.msra.mxu0 0.0
    %212 = vmatprep.subr.mxu0 0.0
    %213 = vmatpush1.msra.mxu0 0.0
    %214 = vmatprep.subr.mxu0 0.0
    %215 = vmatpush1.msra.mxu0 0.0
    %216 = vmatprep.subr.mxu0 0.0
    %217 = vmatpush1.msra.mxu0 0.0
    %218 = vmatprep.subr.mxu0 0.0
    %219 = vmatpush1.msra.mxu0 0.0
    %220 = vmatprep.subr.mxu0 0.0
    %221 = vmatpush1.msra.mxu0 0.0
    %222 = vmatprep.subr.mxu0 0.0
    %223 = vmatpush1.msra.mxu0 0.0
    %224 = vmatprep.subr.mxu0 0.0
    %225 = vmatpush1.msra.mxu0 0.0
    %226 = vmatprep.mubr.f32.mxu0 0.0
    %227 = vmatmul.mubr.f32.gmra.mrb[0].mxu0 %v138
    %v228 = vpop.f32.mrb[0].mxu0
    %v229 = vadd.f32 %v160, %v228
    %v230 = vpop.f32.mrb[0].mxu0
    %231 = vdwg.mxu0
    %v232 = vmax.f32 %v229, 0.0
    %v233 = vld [vmem:[#allocation4] sm:$0xff]
    %v234 = vld [vmem:[#allocation4 + $0x8] sm:$0xff]
    %v235 = vld [vmem:[#allocation4 + $0x10] sm:$0xff]
    %v236 = vld [vmem:[#allocation4 + $0x18] sm:$0xff]
    %v237 = vld [vmem:[#allocation4 + $0x20] sm:$0xff]
    %v238 = vld [vmem:[#allocation4 + $0x28] sm:$0xff]
    %v239 = vld [vmem:[#allocation4 + $0x30] sm:$0xff]
    %v240 = vld [vmem:[#allocation4 + $0x38] sm:$0xff]
    %v241 = vld [vmem:[#allocation4 + $0x40] sm:$0xff]
    %v242 = vld [vmem:[#allocation4 + $0x48] sm:$0xff]
    %v243 = vld [vmem:[#allocation4 + $0x50] sm:$0xff]
    %v244 = vld [vmem:[#allocation4 + $0x58] sm:$0xff]
    %v245 = vld [vmem:[#allocation4 + $0x60] sm:$0xff]
    %v246 = vld [vmem:[#allocation4 + $0x68] sm:$0xff]
    %v247 = vld [vmem:[#allocation4 + $0x70] sm:$0xff]
    %v248 = vld [vmem:[#allocation4 + $0x78] sm:$0xff]
    %v249 = vld [vmem:[%s6] sm:$0x1]
    %v251 = vlaneseq
    %v252 = vshrl.u32 %v251, 7
    %v253 = vsub.s32 0, %v252
    %v254 = vrot.slane %v249, %v253
    %256 = vmatprep.subr.mxu0 0.0
    %257 = vmatpush1.msra.mxu0 %v233
    %258 = vmatprep.subr.mxu0 0.0
    %259 = vmatpush1.msra.mxu0 %v234
    %260 = vmatprep.subr.mxu0 0.0
    %261 = vmatpush1.msra.mxu0 %v235
    %262 = vmatprep.subr.mxu0 0.0
    %263 = vmatpush1.msra.mxu0 %v236
    %264 = vmatprep.subr.mxu0 0.0
    %265 = vmatpush1.msra.mxu0 %v237
    %266 = vmatprep.subr.mxu0 0.0
    %267 = vmatpush1.msra.mxu0 %v238
    %268 = vmatprep.subr.mxu0 0.0
    %269 = vmatpush1.msra.mxu0 %v239
    %270 = vmatprep.subr.mxu0 0.0
    %271 = vmatpush1.msra.mxu0 %v240
    %272 = vmatprep.subr.mxu0 0.0
    %273 = vmatpush1.msra.mxu0 %v241
    %274 = vmatprep.subr.mxu0 0.0
    %275 = vmatpush1.msra.mxu0 %v242
    %276 = vmatprep.subr.mxu0 0.0
    %277 = vmatpush1.msra.mxu0 %v243
    %278 = vmatprep.subr.mxu0 0.0
    %279 = vmatpush1.msra.mxu0 %v244
    %280 = vmatprep.subr.mxu0 0.0
    %281 = vmatpush1.msra.mxu0 %v245
    %282 = vmatprep.subr.mxu0 0.0
    %283 = vmatpush1.msra.mxu0 %v246
    %284 = vmatprep.subr.mxu0 0.0
    %285 = vmatpush1.msra.mxu0 %v247
    %286 = vmatprep.subr.mxu0 0.0
    %287 = vmatpush1.msra.mxu0 %v248
    %288 = vmatprep.subr.mxu0 0.0
    %289 = vmatpush1.msra.mxu0 0.0
    %290 = vmatprep.subr.mxu0 0.0
    %291 = vmatpush1.msra.mxu0 0.0
    %292 = vmatprep.subr.mxu0 0.0
    %293 = vmatpush1.msra.mxu0 0.0
    %294 = vmatprep.subr.mxu0 0.0
    %295 = vmatpush1.msra.mxu0 0.0
    %296 = vmatprep.subr.mxu0 0.0
    %297 = vmatpush1.msra.mxu0 0.0
    %298 = vmatprep.subr.mxu0 0.0
    %299 = vmatpush1.msra.mxu0 0.0
    %300 = vmatprep.subr.mxu0 0.0
    %301 = vmatpush1.msra.mxu0 0.0
    %302 = vmatprep.subr.mxu0 0.0
    %303 = vmatpush1.msra.mxu0 0.0
    %304 = vmatprep.subr.mxu0 0.0
    %305 = vmatpush1.msra.mxu0 0.0
    %306 = vmatprep.subr.mxu0 0.0
    %307 = vmatpush1.msra.mxu0 0.0
    %308 = vmatprep.subr.mxu0 0.0
    %309 = vmatpush1.msra.mxu0 0.0
    %310 = vmatprep.subr.mxu0 0.0
    %311 = vmatpush1.msra.mxu0 0.0
    %312 = vmatprep.subr.mxu0 0.0
    %313 = vmatpush1.msra.mxu0 0.0
    %314 = vmatprep.subr.mxu0 0.0
    %315 = vmatpush1.msra.mxu0 0.0
    %316 = vmatprep.subr.mxu0 0.0
    %317 = vmatpush1.msra.mxu0 0.0
    %318 = vmatprep.subr.mxu0 0.0
    %319 = vmatpush1.msra.mxu0 0.0
    %320 = vmatprep.mubr.f32.mxu0 0.0
    %321 = vmatmul.mubr.f32.gmra.mrb[0].mxu0 %v232
    %v322 = vpop.f32.mrb[0].mxu0
    %v323 = vadd.f32 %v254, %v322
    %v324 = vpop.f32.mrb[0].mxu0
    %325 = vdwg.mxu0
    %v326 = vlaneseq
    %v327 = vshrl.u32 %v326, 7
    %vm328 = vcmp.lt.s32.totalorder %v327, 4
    %v329 = vsel %vm328, %v323, -1e+30
    %v330 = vrot.slane %v329, 4
    %v331 = vmax.f32 %v329, %v330
    %v332 = vrot.slane %v331, 2
    %v333 = vmax.f32 %v331, %v332
    %v334 = vrot.slane %v333, 1
    %v335 = vmax.f32 %v333, %v334
    %v336 = vsub.f32 %v329, %v335
    %v337 = vmul.f32 %v336, 1.442695
    %v338 = vpow.pop %v337
    %v339 = vrot.slane %v338, 4
    %v340 = vadd.f32 %v338, %v339
    %v341 = vrot.slane %v340, 2
    %v342 = vadd.f32 %v340, %v341
    %v343 = vrot.slane %v342, 1
    %v344 = vadd.f32 %v342, %v343
    %v345 = vrcp.pop %v344
    %v346 = vmul.f32 %v344, %v345
    %v347 = vsub.f32 2.0, %v346
    %v348 = vmul.f32 %v345, %v347
    %v349 = vmul.f32 %v338, %v348
    %350 = vst [vmem:[%s7] sm:$0xff] %v349
    // Predicated region
    $region38: #{policy_net_forward.1} parent=1 // pred_check
      _
    $region39: #{policy_net_forward.1} parent=1 // pred_check_branch
      %352 = sbr.rel (0) target = $region41
    $region40: #{policy_net_forward.1} parent=1 // pred_region
      _
    $region41: #{policy_net_forward.1} parent=1 // pred_fallthru
      _
    // Predicated region
    $region42: #{policy_net_forward.1} parent=1 // pred_check
      _
    $region43: #{policy_net_forward.1} parent=1 // pred_check_branch
      %354 = sbr.rel (0) target = $region45
    $region44: #{policy_net_forward.1} parent=1 // pred_region
      _
    $region45: #{policy_net_forward.1} parent=1 // pred_fallthru
      _
    %355 = vsyncpa [#allocation3], 1
    %356 = vsyncpa [#allocation5], 1

</llo_original>
